<compile_context>
chip_gen: v7x
topology: tpu7x:2x2x1
jax: 0.10.0
libtpu: 0.0.40
codegen_flags: <defaults>
</compile_context>

<pallas_src>
import functools

import jax
import jax.numpy as jnp
from jax.experimental import pallas as pl
from jax.experimental.pallas import tpu as pltpu

RHO = 0.5
_LANE = 128


def _round_up(x, mult):
    return (x + mult - 1) // mult * mult


def _lineq_auglag_kernel(x_ref, w_ref, c_ref, b_ref, lam_ref, out_ref, *,
                         n_pad, m_pad):
    x = x_ref[...]                                                    # (TB, Np)

    # One fused MXU contraction against W = [Q | A^T] -> (TB, Np + Mp).
    # Precision pinned so the f32 result is not silently demoted to bf16.
    xw = jnp.dot(x, w_ref[...],
                 preferred_element_type=jnp.float32,
                 precision=jax.lax.Precision.HIGHEST)
    qx = xw[:, :n_pad]        # lane-aligned slice (n_pad % 128 == 0)
    ax = xw[:, n_pad:]        # lane-aligned slice

    # LinEq_Constraint.forward(x) = A x - b  (padded rows are exactly 0).
    constr = ax - b_ref[...]                                          # (TB, Mp)
    out_ref[:, :m_pad] = constr               # unmasked lane-dense store

    # Augmented Lagrangian:
    #   0.5 x^T Q x + c^T x + dual^T constr + rho/2 ||constr||^2
    # Two independent row-reductions (dual-issue on the XLU units) instead of
    # a concatenate + single reduce.
    obj = jnp.sum((0.5 * qx + c_ref[...]) * x, axis=-1, keepdims=True)
    pen = jnp.sum((lam_ref[...] + (0.5 * RHO) * constr) * constr,
                  axis=-1, keepdims=True)
    lag = obj + pen                                                   # (TB, 1)

    # Lag shares the output stream: broadcast across the trailing 128 lanes
    # (wrapper reads lane m_pad back).
    out_ref[:, m_pad:] = jnp.broadcast_to(lag, (out_ref.shape[0], _LANE))


def prepare_lineq_auglag_params(Q, c, A, b, dual):
    """One-time layout prep — hoisted out of the per-call path (problem data
    are constants of the ALM outer loop).  Pads N, M to multiples of 128."""
    n = Q.shape[0]
    m = A.shape[0]
    n_pad = _round_up(n, _LANE)
    m_pad = _round_up(m, _LANE)

    Qp = jnp.zeros((n_pad, n_pad), jnp.float32).at[:n, :n].set(
        Q.astype(jnp.float32))
    Ap = jnp.zeros((m_pad, n_pad), jnp.float32).at[:m, :n].set(
        A.astype(jnp.float32))
    W = jnp.concatenate([Qp, Ap.T], axis=1)                       # (Np, Np+Mp)

    cp = jnp.zeros((1, n_pad), jnp.float32).at[0, :n].set(c.astype(jnp.float32))
    bp = jnp.zeros((1, m_pad), jnp.float32).at[0, :m].set(b.astype(jnp.float32))
    lp = jnp.zeros((1, m_pad), jnp.float32).at[0, :m].set(
        dual.astype(jnp.float32))

    return dict(W=W, c=cp, b=bp, dual=lp, n=n, m=m, n_pad=n_pad, m_pad=m_pad)


def _pick_batch_tile(B):
    if B < 16:
        return B
    # Keep >= 2 grid steps so multi-TC chips (v7x) can split the batch axis;
    # cap at 256 rows (full MXU LHS tiles, moderate VMEM).
    cap = min(256, B // 2)
    cap -= cap % 8
    for tb in range(cap, 7, -8):
        if B % tb == 0:
            return tb
    return B


def lineq_auglag_forward(xb, params, *, batch_tile=None):
    """xb: (B, N) batch of primal candidates.

    Returns:
      constr    : (B, M)  = A x - b     (the module's forward output)
      lag       : (B,)    augmented-Lagrangian value per candidate
      satisfied : scalar bool, (constr == 0).all()
    """
    B, n = xb.shape
    assert n == params["n"]
    m, n_pad, m_pad = params["m"], params["n_pad"], params["m_pad"]
    W, c, b, lam = params["W"], params["c"], params["b"], params["dual"]

    # Zero-pad x columns to the padded primal dimension.
    xp = jnp.zeros((B, n_pad), jnp.float32).at[:, :n].set(
        xb.astype(jnp.float32))

    tb = batch_tile if batch_tile is not None else _pick_batch_tile(B)
    assert B % tb == 0 and (tb == B or tb % 8 == 0)

    # VMEM budget (W single-buffered via Buffered(1); x / out double-buffered).
    w_bytes = int(W.size) * 4
    io_bytes = 2 * tb * (n_pad + m_pad + _LANE) * 4
    need = w_bytes + io_bytes + (2 << 20)
    vmem_limit = None
    if need > 32 * 1024 * 1024:
        vmem_limit = int(min(need + need // 4, 110 * 1024 * 1024))

    cost = pl.CostEstimate(
        flops=2 * B * n_pad * (n_pad + m_pad) + 6 * B * (n_pad + m_pad),
        transcendentals=0,
        bytes_accessed=4 * (B * n_pad + n_pad * (n_pad + m_pad)
                            + n_pad + 2 * m_pad + B * (m_pad + _LANE)),
    )

    const_kw = dict(pipeline_mode=pl.Buffered(1))   # resident, no double-buffer
    kernel = functools.partial(_lineq_auglag_kernel, n_pad=n_pad, m_pad=m_pad)

    out = pl.pallas_call(
        kernel,
        grid=(B // tb,),
        in_specs=[
            pl.BlockSpec((tb, n_pad), lambda i: (i, 0)),              # x tile
            pl.BlockSpec((n_pad, n_pad + m_pad), lambda i: (0, 0),    # W = [Q|A^T]
                         **const_kw),
            pl.BlockSpec((1, n_pad), lambda i: (0, 0), **const_kw),   # c
            pl.BlockSpec((1, m_pad), lambda i: (0, 0), **const_kw),   # b
            pl.BlockSpec((1, m_pad), lambda i: (0, 0), **const_kw),   # dual
        ],
        out_specs=pl.BlockSpec((tb, m_pad + _LANE), lambda i: (i, 0)),
        out_shape=jax.ShapeDtypeStruct((B, m_pad + _LANE), jnp.float32),
        compiler_params=pltpu.CompilerParams(
            dimension_semantics=("parallel",),
            vmem_limit_bytes=vmem_limit),
        cost_estimate=cost,
    )(xp, W, c, b, lam)

    constr = out[:, :m]
    lag = out[:, m_pad]

    # TODO(synk): the module stores `self.satisfied` as mutable state; here it
    # is returned as a value instead (same exact-equality test as the module).
    satisfied = jnp.all(constr == 0)
    return constr, lag, satisfied


def _reference(xb, Q, c, A, b, dual):
    hp = jax.lax.Precision.HIGHEST
    constr = jnp.dot(xb, A.T, precision=hp) - b[None, :]
    qx = jnp.dot(xb, Q, precision=hp)
    obj = 0.5 * jnp.sum(qx * xb, axis=-1) + jnp.dot(xb, c, precision=hp)
    lag = (obj + jnp.dot(constr, dual, precision=hp)
           + 0.5 * RHO * jnp.sum(constr * constr, axis=-1))
    return constr, lag


if __name__ == "__main__":
    # Non-128-aligned sizes exercise the padding path.
    N, M, B = 120, 72, 8   # primal dim, #constraints, batch of candidates

    key = jax.random.PRNGKey(0)
    kx, kq, kc, ka, kb, kl = jax.random.split(key, 6)

    xb = jax.random.normal(kx, (B, N), dtype=jnp.float32)
    Q0 = jax.random.normal(kq, (N, N), dtype=jnp.float32) * 0.1
    Q = Q0 + Q0.T                                   # symmetric quadratic form
    c = jax.random.normal(kc, (N,), dtype=jnp.float32)
    A = jax.random.normal(ka, (M, N), dtype=jnp.float32) * 0.1
    b = jax.random.normal(kb, (M,), dtype=jnp.float32)
    dual = jax.random.normal(kl, (M,), dtype=jnp.float32)

    params = prepare_lineq_auglag_params(Q, c, A, b, dual)   # hoisted, one-time
    constr, lag, satisfied = lineq_auglag_forward(xb, params)
    constr, lag = jax.block_until_ready((constr, lag))

    constr_ref, lag_ref = _reference(xb, Q, c, A, b, dual)
    assert jnp.allclose(constr, constr_ref, rtol=1e-4, atol=1e-3), "constraint mismatch"
    assert jnp.allclose(lag, lag_ref, rtol=1e-4, atol=1e-3), (lag, lag_ref)
    assert not bool(satisfied)

    print("KERNEL_OK")
</pallas_src>

<mosaic_0001>
module attributes {stable_mosaic.version = 11 : i64} {
  func.func @_lineq_auglag_kernel(%arg0: i32, %arg1: memref<8x128xf32, #tpu.memory_space<vmem>>, %arg2: memref<128x256xf32, #tpu.memory_space<vmem>>, %arg3: memref<1x128xf32, #tpu.memory_space<vmem>>, %arg4: memref<1x128xf32, #tpu.memory_space<vmem>>, %arg5: memref<1x128xf32, #tpu.memory_space<vmem>>, %arg6: memref<8x256xf32, #tpu.memory_space<vmem>>) attributes {dimension_semantics = [#tpu.dimension_semantics<parallel>], iteration_bounds = array<i64: 1>, scalar_prefetch = 0 : i64, scratch_operands = 0 : i64, tpu.core_type = #tpu.core_type<tc>, window_params = [{transform_indices = @transform_0, window_bounds = array<i64: 8, 128>}, {pipeline_mode = #tpu.pipeline_mode<synchronous>, transform_indices = @transform_1, window_bounds = array<i64: 128, 256>}, {pipeline_mode = #tpu.pipeline_mode<synchronous>, transform_indices = @transform_2, window_bounds = array<i64: 1, 128>}, {pipeline_mode = #tpu.pipeline_mode<synchronous>, transform_indices = @transform_3, window_bounds = array<i64: 1, 128>}, {pipeline_mode = #tpu.pipeline_mode<synchronous>, transform_indices = @transform_4, window_bounds = array<i64: 1, 128>}, {transform_indices = @transform_5, window_bounds = array<i64: 8, 256>}]} {
    %c0 = arith.constant 0 : index
    %c0_0 = arith.constant 0 : index
    %0 = vector.load %arg1[%c0, %c0_0] : memref<8x128xf32, #tpu.memory_space<vmem>>, vector<8x128xf32>
    %c0_1 = arith.constant 0 : index
    %c0_2 = arith.constant 0 : index
    %1 = vector.load %arg2[%c0_1, %c0_2] : memref<128x256xf32, #tpu.memory_space<vmem>>, vector<128x256xf32>
    %cst = arith.constant dense<0.000000e+00> : vector<8x256xf32>
    %2 = tpu.matmul %0, %1, %cst {dimension_numbers = #tpu.dot_dimension_numbers<[1], [0], [0], [1], [0, 0, 1, 1], [], []>, precision = #tpu.contract_precision<fp32>} : vector<8x128xf32>, vector<128x256xf32>, vector<8x256xf32> -> vector<8x256xf32>
    %3 = vector.extract_strided_slice %2 {offsets = [0, 0], sizes = [8, 128], strides = [1, 1]} : vector<8x256xf32> to vector<8x128xf32>
    %4 = vector.extract_strided_slice %2 {offsets = [0, 128], sizes = [8, 128], strides = [1, 1]} : vector<8x256xf32> to vector<8x128xf32>
    %c0_3 = arith.constant 0 : index
    %c0_4 = arith.constant 0 : index
    %5 = vector.load %arg4[%c0_3, %c0_4] : memref<1x128xf32, #tpu.memory_space<vmem>>, vector<1x128xf32>
    %6 = vector.broadcast %5 : vector<1x128xf32> to vector<8x128xf32>
    %7 = arith.subf %4, %6 : vector<8x128xf32>
    %c0_5 = arith.constant 0 : index
    %c0_6 = arith.constant 0 : index
    %8 = vector.load %arg6[%c0_5, %c0_6] : memref<8x256xf32, #tpu.memory_space<vmem>>, vector<8x128xf32>
    tpu.vector_store %arg6[%c0_5, %c0_6], %7 {strides = array<i32>} : memref<8x256xf32, #tpu.memory_space<vmem>>, vector<8x128xf32>,
    %cst_7 = arith.constant 5.000000e-01 : f32
    %9 = vector.broadcast %cst_7 : f32 to vector<8x128xf32>
    %10 = arith.mulf %9, %3 : vector<8x128xf32>
    %c0_8 = arith.constant 0 : index
    %c0_9 = arith.constant 0 : index
    %11 = vector.load %arg3[%c0_8, %c0_9] : memref<1x128xf32, #tpu.memory_space<vmem>>, vector<1x128xf32>
    %12 = vector.broadcast %11 : vector<1x128xf32> to vector<8x128xf32>
    %13 = arith.addf %10, %12 : vector<8x128xf32>
    %14 = arith.mulf %13, %0 : vector<8x128xf32>
    %cst_10 = arith.constant dense<0.000000e+00> : vector<8xf32>
    %15 = vector.multi_reduction <add>, %14, %cst_10 [1] : vector<8x128xf32> to vector<8xf32>
    %16 = vector.shape_cast %15 : vector<8xf32> to vector<8x1xf32>
    %c0_11 = arith.constant 0 : index
    %c0_12 = arith.constant 0 : index
    %17 = vector.load %arg5[%c0_11, %c0_12] : memref<1x128xf32, #tpu.memory_space<vmem>>, vector<1x128xf32>
    %cst_13 = arith.constant 2.500000e-01 : f32
    %18 = vector.broadcast %cst_13 : f32 to vector<8x128xf32>
    %19 = arith.mulf %18, %7 : vector<8x128xf32>
    %20 = vector.broadcast %17 : vector<1x128xf32> to vector<8x128xf32>
    %21 = arith.addf %20, %19 : vector<8x128xf32>
    %22 = arith.mulf %21, %7 : vector<8x128xf32>
    %cst_14 = arith.constant dense<0.000000e+00> : vector<8xf32>
    %23 = vector.multi_reduction <add>, %22, %cst_14 [1] : vector<8x128xf32> to vector<8xf32>
    %24 = vector.shape_cast %23 : vector<8xf32> to vector<8x1xf32>
    %25 = arith.addf %16, %24 : vector<8x1xf32>
    %26 = vector.shape_cast %25 : vector<8x1xf32> to vector<8x1xf32>
    %27 = vector.broadcast %26 : vector<8x1xf32> to vector<8x128xf32>
    %c0_15 = arith.constant 0 : index
    %c128 = arith.constant 128 : index
    %28 = vector.load %arg6[%c0_15, %c128] : memref<8x256xf32, #tpu.memory_space<vmem>>, vector<8x128xf32>
    tpu.vector_store %arg6[%c0_15, %c128], %27 {strides = array<i32>} : memref<8x256xf32, #tpu.memory_space<vmem>>, vector<8x128xf32>,
    return
  }
  func.func @transform_0(%arg0: i32) -> (i32, i32) {
    %c0_i32 = arith.constant 0 : i32
    %c0_i32_0 = arith.constant 0 : i32
    return %arg0, %c0_i32 : i32, i32
  }
  func.func @transform_1(%arg0: i32) -> (i32, i32) {
    %c0_i32 = arith.constant 0 : i32
    %c0_i32_0 = arith.constant 0 : i32
    %c0_i32_1 = arith.constant 0 : i32
    return %c0_i32, %c0_i32_0 : i32, i32
  }
  func.func @transform_2(%arg0: i32) -> (i32, i32) {
    %c0_i32 = arith.constant 0 : i32
    %c0_i32_0 = arith.constant 0 : i32
    %c0_i32_1 = arith.constant 0 : i32
    return %c0_i32, %c0_i32_0 : i32, i32
  }
  func.func @transform_3(%arg0: i32) -> (i32, i32) {
    %c0_i32 = arith.constant 0 : i32
    %c0_i32_0 = arith.constant 0 : i32
    %c0_i32_1 = arith.constant 0 : i32
    return %c0_i32, %c0_i32_0 : i32, i32
  }
  func.func @transform_4(%arg0: i32) -> (i32, i32) {
    %c0_i32 = arith.constant 0 : i32
    %c0_i32_0 = arith.constant 0 : i32
    %c0_i32_1 = arith.constant 0 : i32
    return %c0_i32, %c0_i32_0 : i32, i32
  }
  func.func @transform_5(%arg0: i32) -> (i32, i32) {
    %c0_i32 = arith.constant 0 : i32
    %c0_i32_0 = arith.constant 0 : i32
    return %arg0, %c0_i32 : i32, i32
  }
}

</mosaic_0001>

<llo_original>
// kernel: tpu_custom_call.1
$region0: #{tpu_custom_call.1}
  #allocation0 [shape = 'u32[]', space=smem, size = 0x4, offset = 0x4, fixed_abs, tag = 'smem constant byte address 0x4 - core index']
  #allocation1 [shape = 'u32[144,128]{1,0:T(1,128)}', space=vmem, size = 0x12000, scoped, tag = 'internal scratch']
  %s0 = inlined_call_operand.hbm [shape: f32[8,128], index: 0, kind: input, shape index: {}]
  %s1 = inlined_call_operand.hbm [shape: f32[128,256], index: 1, kind: input, shape index: {}]
  %s2 = inlined_call_operand.vmem [shape: f32[1,128], index: 2, kind: input, shape index: {}]
  %s3 = inlined_call_operand.vmem [shape: f32[1,128], index: 3, kind: input, shape index: {}]
  %s4 = inlined_call_operand.vmem [shape: f32[1,128], index: 4, kind: input, shape index: {}]
  %s5 = inlined_call_operand.hbm [shape: f32[8,256], index: 5, kind: output, shape index: {}]
  %s6 = sld [smem:[#allocation0]]
  $region38: #{tpu_custom_call.1} parent=0
    _
  %s8 = ssub.s32 1, %s6
  %s9 = scalar_select 0, %s8, %s6
  $region1: #{tpu_custom_call.1} parent=0
    #allocation2 [shape = 'u8[4096]{0}', space=vmem, size = 0x1000, scoped, tag = 'input window, operand 0, single buffered']
    #allocation3 [shape = 's32[1]{0}', space=sflag, size = 0x4, scoped, tag = 'scoped memory for tpu_custom_call.1']
    #allocation4 [shape = 's32[1]{0}', space=sflag, size = 0x4, scoped, tag = 'scoped memory for tpu_custom_call.1']
    #allocation5 [shape = 'u8[131072]{0}', space=vmem, size = 0x20000, scoped, tag = 'input window, operand 1, single buffered']
    #allocation6 [shape = 's32[1]{0}', space=sflag, size = 0x4, scoped, tag = 'scoped memory for tpu_custom_call.1']
    #allocation7 [shape = 'u8[8192]{0}', space=vmem, size = 0x2000, scoped, tag = 'output window, operand 0, single buffered']
    %10 = vsyncpa [#allocation3], 0
    %11 = vsyncpa [#allocation6], 0
    %12 = vsyncpa [#allocation4], 0
    // Predicated region
    $region2: #{tpu_custom_call.1} parent=1 // pred_check
      _
    $region3: #{tpu_custom_call.1} parent=1 // pred_check_branch
      %14 = sbr.rel (0) target = $region5
    $region4: #{tpu_custom_call.1} parent=1 // pred_region
      %s16 = ssub.s32 128, 128
      %17 = vsyncadd [#allocation3], %s16
      %s19 = sshll.u32 [#allocation2], 4
      %s20 = int_to_ptr.vmem [resolvable:$true] %s19
      %22 = dma.hbm_to_vmem [thread:$0]  %s0, 128, %s20, [#allocation3]
    $region5: #{tpu_custom_call.1} parent=1 // pred_fallthru
      _
    // Predicated region
    $region6: #{tpu_custom_call.1} parent=1 // pred_check
      _
    $region7: #{tpu_custom_call.1} parent=1 // pred_check_branch
      %24 = sbr.rel (0) target = $region9
    $region8: #{tpu_custom_call.1} parent=1 // pred_region
      %s26 = ssub.s32 4096, 4096
      %27 = vsyncadd [#allocation6], %s26
      %s28 = sshll.u32 [#allocation5], 4
      %s29 = int_to_ptr.vmem [resolvable:$true] %s28
      %34 = dma.hbm_to_vmem [thread:$0]  %s1, 4096, %s29, [#allocation6], 256, 256, 16
    $region9: #{tpu_custom_call.1} parent=1 // pred_fallthru
      _
    // Predicated region
    $region10: #{tpu_custom_call.1} parent=1 // pred_check
      _
    $region11: #{tpu_custom_call.1} parent=1 // pred_check_branch
      %36 = sbr.rel (0) target = $region13
    $region12: #{tpu_custom_call.1} parent=1 // pred_region
      _
    $region13: #{tpu_custom_call.1} parent=1 // pred_fallthru
      _
    // Predicated region
    $region14: #{tpu_custom_call.1} parent=1 // pred_check
      _
    $region15: #{tpu_custom_call.1} parent=1 // pred_check_branch
      %38 = sbr.rel (0) target = $region17
    $region16: #{tpu_custom_call.1} parent=1 // pred_region
      _
    $region17: #{tpu_custom_call.1} parent=1 // pred_fallthru
      _
    // Predicated region
    $region18: #{tpu_custom_call.1} parent=1 // pred_check
      _
    $region19: #{tpu_custom_call.1} parent=1 // pred_check_branch
      %40 = sbr.rel (0) target = $region21
    $region20: #{tpu_custom_call.1} parent=1 // pred_region
      _
    $region21: #{tpu_custom_call.1} parent=1 // pred_fallthru
      _
    // Predicated region
    $region22: #{tpu_custom_call.1} parent=1 // pred_check
      _
    $region23: #{tpu_custom_call.1} parent=1 // pred_check_branch
      %42 = sbr.rel (0) target = $region25
    $region24: #{tpu_custom_call.1} parent=1 // pred_region
      %43 = dma.done [#allocation3], 128
    $region25: #{tpu_custom_call.1} parent=1 // pred_fallthru
      _
    // Predicated region
    $region26: #{tpu_custom_call.1} parent=1 // pred_check
      _
    $region27: #{tpu_custom_call.1} parent=1 // pred_check_branch
      %45 = sbr.rel (0) target = $region29
    $region28: #{tpu_custom_call.1} parent=1 // pred_region
      %46 = dma.done [#allocation6], 4096
    $region29: #{tpu_custom_call.1} parent=1 // pred_fallthru
      _
    %v47 = vld [vmem:[#allocation2] sm:$0xff]
    %v48 = vld [vmem:[#allocation5] sm:$0xff]
    %v49 = vld [vmem:[#allocation5 + $0x8] sm:$0xff]
    %v50 = vld [vmem:[#allocation5 + $0x10] sm:$0xff]
    %v51 = vld [vmem:[#allocation5 + $0x18] sm:$0xff]
    %v52 = vld [vmem:[#allocation5 + $0x20] sm:$0xff]
    %v53 = vld [vmem:[#allocation5 + $0x28] sm:$0xff]
    %v54 = vld [vmem:[#allocation5 + $0x30] sm:$0xff]
    %v55 = vld [vmem:[#allocation5 + $0x38] sm:$0xff]
    %v56 = vld [vmem:[#allocation5 + $0x40] sm:$0xff]
    %v57 = vld [vmem:[#allocation5 + $0x48] sm:$0xff]
    %v58 = vld [vmem:[#allocation5 + $0x50] sm:$0xff]
    %v59 = vld [vmem:[#allocation5 + $0x58] sm:$0xff]
    %v60 = vld [vmem:[#allocation5 + $0x60] sm:$0xff]
    %v61 = vld [vmem:[#allocation5 + $0x68] sm:$0xff]
    %v62 = vld [vmem:[#allocation5 + $0x70] sm:$0xff]
    %v63 = vld [vmem:[#allocation5 + $0x78] sm:$0xff]
    %v64 = vld [vmem:[#allocation5 + $0x80] sm:$0xff]
    %v65 = vld [vmem:[#allocation5 + $0x88] sm:$0xff]
    %v66 = vld [vmem:[#allocation5 + $0x90] sm:$0xff]
    %v67 = vld [vmem:[#allocation5 + $0x98] sm:$0xff]
    %v68 = vld [vmem:[#allocation5 + $0xa0] sm:$0xff]
    %v69 = vld [vmem:[#allocation5 + $0xa8] sm:$0xff]
    %v70 = vld [vmem:[#allocation5 + $0xb0] sm:$0xff]
    %v71 = vld [vmem:[#allocation5 + $0xb8] sm:$0xff]
    %v72 = vld [vmem:[#allocation5 + $0xc0] sm:$0xff]
    %v73 = vld [vmem:[#allocation5 + $0xc8] sm:$0xff]
    %v74 = vld [vmem:[#allocation5 + $0xd0] sm:$0xff]
    %v75 = vld [vmem:[#allocation5 + $0xd8] sm:$0xff]
    %v76 = vld [vmem:[#allocation5 + $0xe0] sm:$0xff]
    %v77 = vld [vmem:[#allocation5 + $0xe8] sm:$0xff]
    %v78 = vld [vmem:[#allocation5 + $0xf0] sm:$0xff]
    %v79 = vld [vmem:[#allocation5 + $0xf8] sm:$0xff]
    %v80 = vand.u32 %v49, 4294901760
    %81 = vmatprep.subr.mxu0 %v80
    %v82 = vand.u32 %v48, 4294901760
    %83 = vmatpush1.msra.mxu0 %v82
    %v84 = vand.u32 %v51, 4294901760
    %85 = vmatprep.subr.mxu0 %v84
    %v86 = vand.u32 %v50, 4294901760
    %87 = vmatpush1.msra.mxu0 %v86
    %v88 = vand.u32 %v53, 4294901760
    %89 = vmatprep.subr.mxu0 %v88
    %v90 = vand.u32 %v52, 4294901760
    %91 = vmatpush1.msra.mxu0 %v90
    %v92 = vand.u32 %v55, 4294901760
    %93 = vmatprep.subr.mxu0 %v92
    %v94 = vand.u32 %v54, 4294901760
    %95 = vmatpush1.msra.mxu0 %v94
    %v96 = vand.u32 %v57, 4294901760
    %97 = vmatprep.subr.mxu0 %v96
    %v98 = vand.u32 %v56, 4294901760
    %99 = vmatpush1.msra.mxu0 %v98
    %v100 = vand.u32 %v59, 4294901760
    %101 = vmatprep.subr.mxu0 %v100
    %v102 = vand.u32 %v58, 4294901760
    %103 = vmatpush1.msra.mxu0 %v102
    %v104 = vand.u32 %v61, 4294901760
    %105 = vmatprep.subr.mxu0 %v104
    %v106 = vand.u32 %v60, 4294901760
    %107 = vmatpush1.msra.mxu0 %v106
    %v108 = vand.u32 %v63, 4294901760
    %109 = vmatprep.subr.mxu0 %v108
    %v110 = vand.u32 %v62, 4294901760
    %111 = vmatpush1.msra.mxu0 %v110
    %v112 = vand.u32 %v65, 4294901760
    %113 = vmatprep.subr.mxu0 %v112
    %v114 = vand.u32 %v64, 4294901760
    %115 = vmatpush1.msra.mxu0 %v114
    %v116 = vand.u32 %v67, 4294901760
    %117 = vmatprep.subr.mxu0 %v116
    %v118 = vand.u32 %v66, 4294901760
    %119 = vmatpush1.msra.mxu0 %v118
    %v120 = vand.u32 %v69, 4294901760
    %121 = vmatprep.subr.mxu0 %v120
    %v122 = vand.u32 %v68, 4294901760
    %123 = vmatpush1.msra.mxu0 %v122
    %v124 = vand.u32 %v71, 4294901760
    %125 = vmatprep.subr.mxu0 %v124
    %v126 = vand.u32 %v70, 4294901760
    %127 = vmatpush1.msra.mxu0 %v126
    %v128 = vand.u32 %v73, 4294901760
    %129 = vmatprep.subr.mxu0 %v128
    %v130 = vand.u32 %v72, 4294901760
    %131 = vmatpush1.msra.mxu0 %v130
    %v132 = vand.u32 %v75, 4294901760
    %133 = vmatprep.subr.mxu0 %v132
    %v134 = vand.u32 %v74, 4294901760
    %135 = vmatpush1.msra.mxu0 %v134
    %v136 = vand.u32 %v77, 4294901760
    %137 = vmatprep.subr.mxu0 %v136
    %v138 = vand.u32 %v76, 4294901760
    %139 = vmatpush1.msra.mxu0 %v138
    %v140 = vand.u32 %v79, 4294901760
    %141 = vmatprep.subr.mxu0 %v140
    %v142 = vand.u32 %v78, 4294901760
    %143 = vmatpush1.msra.mxu0 %v142
    %144 = vmatprep.subr.mxu0 0.0
    %145 = vmatpush1.msra.mxu0 0.0
    %146 = vmatprep.subr.mxu0 0.0
    %147 = vmatpush1.msra.mxu0 0.0
    %148 = vmatprep.subr.mxu0 0.0
    %149 = vmatpush1.msra.mxu0 0.0
    %150 = vmatprep.subr.mxu0 0.0
    %151 = vmatpush1.msra.mxu0 0.0
    %152 = vmatprep.subr.mxu0 0.0
    %153 = vmatpush1.msra.mxu0 0.0
    %154 = vmatprep.subr.mxu0 0.0
    %155 = vmatpush1.msra.mxu0 0.0
    %156 = vmatprep.subr.mxu0 0.0
    %157 = vmatpush1.msra.mxu0 0.0
    %158 = vmatprep.subr.mxu0 0.0
    %159 = vmatpush1.msra.mxu0 0.0
    %160 = vmatprep.subr.mxu0 0.0
    %161 = vmatpush1.msra.mxu0 0.0
    %162 = vmatprep.subr.mxu0 0.0
    %163 = vmatpush1.msra.mxu0 0.0
    %164 = vmatprep.subr.mxu0 0.0
    %165 = vmatpush1.msra.mxu0 0.0
    %166 = vmatprep.subr.mxu0 0.0
    %167 = vmatpush1.msra.mxu0 0.0
    %168 = vmatprep.subr.mxu0 0.0
    %169 = vmatpush1.msra.mxu0 0.0
    %170 = vmatprep.subr.mxu0 0.0
    %171 = vmatpush1.msra.mxu0 0.0
    %172 = vmatprep.subr.mxu0 0.0
    %173 = vmatpush1.msra.mxu0 0.0
    %174 = vmatprep.subr.mxu0 0.0
    %175 = vmatpush1.msra.mxu0 0.0
    %176 = vmatprep.mubr.f32.mxu0 0.0
    %v177 = vand.u32 %v47, 4294901760
    %v178 = vsub.f32 %v47, %v177
    %v179 = vand.u32 %v178, 4294901760
    %v180 = vsub.f32 %v178, %v179
    %v181 = vand.u32 %v180, 4294901760
    %182 = vmatmul.mubr.f32.gmra.mrb[0].mxu0 %v181
    %v183 = vpop.f32.mrb[0].mxu0
    %v184 = vadd.f32 0.0, %v183
    %v185 = vpop.f32.mrb[0].mxu0
    %v186 = vadd.f32 0.0, %v185
    %187 = vdwg.mxu0
    %v188 = vand.u32 %v49, 4294901760
    %v189 = vsub.f32 %v49, %v188
    %v190 = vand.u32 %v189, 4294901760
    %v191 = vsub.f32 %v189, %v190
    %v192 = vand.u32 %v191, 4294901760
    %193 = vmatprep.subr.mxu0 %v192
    %v194 = vand.u32 %v48, 4294901760
    %v195 = vsub.f32 %v48, %v194
    %v196 = vand.u32 %v195, 4294901760
    %v197 = vsub.f32 %v195, %v196
    %v198 = vand.u32 %v197, 4294901760
    %199 = vmatpush1.msra.mxu0 %v198
    %v200 = vand.u32 %v51, 4294901760
    %v201 = vsub.f32 %v51, %v200
    %v202 = vand.u32 %v201, 4294901760
    %v203 = vsub.f32 %v201, %v202
    %v204 = vand.u32 %v203, 4294901760
    %205 = vmatprep.subr.mxu0 %v204
    %v206 = vand.u32 %v50, 4294901760
    %v207 = vsub.f32 %v50, %v206
    %v208 = vand.u32 %v207, 4294901760
    %v209 = vsub.f32 %v207, %v208
    %v210 = vand.u32 %v209, 4294901760
    %211 = vmatpush1.msra.mxu0 %v210
    %v212 = vand.u32 %v53, 4294901760
    %v213 = vsub.f32 %v53, %v212
    %v214 = vand.u32 %v213, 4294901760
    %v215 = vsub.f32 %v213, %v214
    %v216 = vand.u32 %v215, 4294901760
    %217 = vmatprep.subr.mxu0 %v216
    %v218 = vand.u32 %v52, 4294901760
    %v219 = vsub.f32 %v52, %v218
    %v220 = vand.u32 %v219, 4294901760
    %v221 = vsub.f32 %v219, %v220
    %v222 = vand.u32 %v221, 4294901760
    %223 = vmatpush1.msra.mxu0 %v222
    %v224 = vand.u32 %v55, 4294901760
    %v225 = vsub.f32 %v55, %v224
    %v226 = vand.u32 %v225, 4294901760
    %v227 = vsub.f32 %v225, %v226
    %v228 = vand.u32 %v227, 4294901760
    %229 = vmatprep.subr.mxu0 %v228
    %v230 = vand.u32 %v54, 4294901760
    %v231 = vsub.f32 %v54, %v230
    %v232 = vand.u32 %v231, 4294901760
    %v233 = vsub.f32 %v231, %v232
    %v234 = vand.u32 %v233, 4294901760
    %235 = vmatpush1.msra.mxu0 %v234
    %v236 = vand.u32 %v57, 4294901760
    %v237 = vsub.f32 %v57, %v236
    %v238 = vand.u32 %v237, 4294901760
    %v239 = vsub.f32 %v237, %v238
    %v240 = vand.u32 %v239, 4294901760
    %241 = vmatprep.subr.mxu0 %v240
    %v242 = vand.u32 %v56, 4294901760
    %v243 = vsub.f32 %v56, %v242
    %v244 = vand.u32 %v243, 4294901760
    %v245 = vsub.f32 %v243, %v244
    %v246 = vand.u32 %v245, 4294901760
    %247 = vmatpush1.msra.mxu0 %v246
    %v248 = vand.u32 %v59, 4294901760
    %v249 = vsub.f32 %v59, %v248
    %v250 = vand.u32 %v249, 4294901760
    %v251 = vsub.f32 %v249, %v250
    %v252 = vand.u32 %v251, 4294901760
    %253 = vmatprep.subr.mxu0 %v252
    %v254 = vand.u32 %v58, 4294901760
    %v255 = vsub.f32 %v58, %v254
    %v256 = vand.u32 %v255, 4294901760
    %v257 = vsub.f32 %v255, %v256
    %v258 = vand.u32 %v257, 4294901760
    %259 = vmatpush1.msra.mxu0 %v258
    %v260 = vand.u32 %v61, 4294901760
    %v261 = vsub.f32 %v61, %v260
    %v262 = vand.u32 %v261, 4294901760
    %v263 = vsub.f32 %v261, %v262
    %v264 = vand.u32 %v263, 4294901760
    %265 = vmatprep.subr.mxu0 %v264
    %v266 = vand.u32 %v60, 4294901760
    %v267 = vsub.f32 %v60, %v266
    %v268 = vand.u32 %v267, 4294901760
    %v269 = vsub.f32 %v267, %v268
    %v270 = vand.u32 %v269, 4294901760
    %271 = vmatpush1.msra.mxu0 %v270
    %v272 = vand.u32 %v63, 4294901760
    %v273 = vsub.f32 %v63, %v272
    %v274 = vand.u32 %v273, 4294901760
    %v275 = vsub.f32 %v273, %v274
    %v276 = vand.u32 %v275, 4294901760
    %277 = vmatprep.subr.mxu0 %v276
    %v278 = vand.u32 %v62, 4294901760
    %v279 = vsub.f32 %v62, %v278
    %v280 = vand.u32 %v279, 4294901760
    %v281 = vsub.f32 %v279, %v280
    %v282 = vand.u32 %v281, 4294901760
    %283 = vmatpush1.msra.mxu0 %v282
    %v284 = vand.u32 %v65, 4294901760
    %v285 = vsub.f32 %v65, %v284
    %v286 = vand.u32 %v285, 4294901760
    %v287 = vsub.f32 %v285, %v286
    %v288 = vand.u32 %v287, 4294901760
    %289 = vmatprep.subr.mxu0 %v288
    %v290 = vand.u32 %v64, 4294901760
    %v291 = vsub.f32 %v64, %v290
    %v292 = vand.u32 %v291, 4294901760
    %v293 = vsub.f32 %v291, %v292
    %v294 = vand.u32 %v293, 4294901760
    %295 = vmatpush1.msra.mxu0 %v294
    %v296 = vand.u32 %v67, 4294901760
    %v297 = vsub.f32 %v67, %v296
    %v298 = vand.u32 %v297, 4294901760
    %v299 = vsub.f32 %v297, %v298
    %v300 = vand.u32 %v299, 4294901760
    %301 = vmatprep.subr.mxu0 %v300
    %v302 = vand.u32 %v66, 4294901760
    %v303 = vsub.f32 %v66, %v302
    %v304 = vand.u32 %v303, 4294901760
    %v305 = vsub.f32 %v303, %v304
    %v306 = vand.u32 %v305, 4294901760
    %307 = vmatpush1.msra.mxu0 %v306
    %v308 = vand.u32 %v69, 4294901760
    %v309 = vsub.f32 %v69, %v308
    %v310 = vand.u32 %v309, 4294901760
    %v311 = vsub.f32 %v309, %v310
    %v312 = vand.u32 %v311, 4294901760
    %313 = vmatprep.subr.mxu0 %v312
    %v314 = vand.u32 %v68, 4294901760
    %v315 = vsub.f32 %v68, %v314
    %v316 = vand.u32 %v315, 4294901760
    %v317 = vsub.f32 %v315, %v316
    %v318 = vand.u32 %v317, 4294901760
    %319 = vmatpush1.msra.mxu0 %v318
    %v320 = vand.u32 %v71, 4294901760
    %v321 = vsub.f32 %v71, %v320
    %v322 = vand.u32 %v321, 4294901760
    %v323 = vsub.f32 %v321, %v322
    %v324 = vand.u32 %v323, 4294901760
    %325 = vmatprep.subr.mxu0 %v324
    %v326 = vand.u32 %v70, 4294901760
    %v327 = vsub.f32 %v70, %v326
    %v328 = vand.u32 %v327, 4294901760
    %v329 = vsub.f32 %v327, %v328
    %v330 = vand.u32 %v329, 4294901760
    %331 = vmatpush1.msra.mxu0 %v330
    %v332 = vand.u32 %v73, 4294901760
    %v333 = vsub.f32 %v73, %v332
    %v334 = vand.u32 %v333, 4294901760
    %v335 = vsub.f32 %v333, %v334
    %v336 = vand.u32 %v335, 4294901760
    %337 = vmatprep.subr.mxu0 %v336
    %v338 = vand.u32 %v72, 4294901760
    %v339 = vsub.f32 %v72, %v338
    %v340 = vand.u32 %v339, 4294901760
    %v341 = vsub.f32 %v339, %v340
    %v342 = vand.u32 %v341, 4294901760
    %343 = vmatpush1.msra.mxu0 %v342
    %v344 = vand.u32 %v75, 4294901760
    %v345 = vsub.f32 %v75, %v344
    %v346 = vand.u32 %v345, 4294901760
    %v347 = vsub.f32 %v345, %v346
    %v348 = vand.u32 %v347, 4294901760
    %349 = vmatprep.subr.mxu0 %v348
    %v350 = vand.u32 %v74, 4294901760
    %v351 = vsub.f32 %v74, %v350
    %v352 = vand.u32 %v351, 4294901760
    %v353 = vsub.f32 %v351, %v352
    %v354 = vand.u32 %v353, 4294901760
    %355 = vmatpush1.msra.mxu0 %v354
    %v356 = vand.u32 %v77, 4294901760
    %v357 = vsub.f32 %v77, %v356
    %v358 = vand.u32 %v357, 4294901760
    %v359 = vsub.f32 %v357, %v358
    %v360 = vand.u32 %v359, 4294901760
    %361 = vmatprep.subr.mxu0 %v360
    %v362 = vand.u32 %v76, 4294901760
    %v363 = vsub.f32 %v76, %v362
    %v364 = vand.u32 %v363, 4294901760
    %v365 = vsub.f32 %v363, %v364
    %v366 = vand.u32 %v365, 4294901760
    %367 = vmatpush1.msra.mxu0 %v366
    %v368 = vand.u32 %v79, 4294901760
    %v369 = vsub.f32 %v79, %v368
    %v370 = vand.u32 %v369, 4294901760
    %v371 = vsub.f32 %v369, %v370
    %v372 = vand.u32 %v371, 4294901760
    %373 = vmatprep.subr.mxu0 %v372
    %v374 = vand.u32 %v78, 4294901760
    %v375 = vsub.f32 %v78, %v374
    %v376 = vand.u32 %v375, 4294901760
    %v377 = vsub.f32 %v375, %v376
    %v378 = vand.u32 %v377, 4294901760
    %379 = vmatpush1.msra.mxu0 %v378
    %380 = vmatprep.subr.mxu0 0.0
    %381 = vmatpush1.msra.mxu0 0.0
    %382 = vmatprep.subr.mxu0 0.0
    %383 = vmatpush1.msra.mxu0 0.0
    %384 = vmatprep.subr.mxu0 0.0
    %385 = vmatpush1.msra.mxu0 0.0
    %386 = vmatprep.subr.mxu0 0.0
    %387 = vmatpush1.msra.mxu0 0.0
    %388 = vmatprep.subr.mxu0 0.0
    %389 = vmatpush1.msra.mxu0 0.0
    %390 = vmatprep.subr.mxu0 0.0
    %391 = vmatpush1.msra.mxu0 0.0
    %392 = vmatprep.subr.mxu0 0.0
    %393 = vmatpush1.msra.mxu0 0.0
    %394 = vmatprep.subr.mxu0 0.0
    %395 = vmatpush1.msra.mxu0 0.0
    %396 = vmatprep.subr.mxu0 0.0
    %397 = vmatpush1.msra.mxu0 0.0
    %398 = vmatprep.subr.mxu0 0.0
    %399 = vmatpush1.msra.mxu0 0.0
    %400 = vmatprep.subr.mxu0 0.0
    %401 = vmatpush1.msra.mxu0 0.0
    %402 = vmatprep.subr.mxu0 0.0
    %403 = vmatpush1.msra.mxu0 0.0
    %404 = vmatprep.subr.mxu0 0.0
    %405 = vmatpush1.msra.mxu0 0.0
    %406 = vmatprep.subr.mxu0 0.0
    %407 = vmatpush1.msra.mxu0 0.0
    %408 = vmatprep.subr.mxu0 0.0
    %409 = vmatpush1.msra.mxu0 0.0
    %410 = vmatprep.subr.mxu0 0.0
    %411 = vmatpush1.msra.mxu0 0.0
    %412 = vmatprep.mubr.f32.mxu0 0.0
    %v413 = vand.u32 %v47, 4294901760
    %414 = vmatmul.mubr.f32.gmra.mrb[0].mxu0 %v413
    %v415 = vpop.f32.mrb[0].mxu0
    %v416 = vadd.f32 %v184, %v415
    %v417 = vpop.f32.mrb[0].mxu0
    %v418 = vadd.f32 %v186, %v417
    %419 = vdwg.mxu0
    %v420 = vand.u32 %v49, 4294901760
    %v421 = vsub.f32 %v49, %v420
    %422 = vmatprep.subr.mxu0 %v421
    %v423 = vand.u32 %v48, 4294901760
    %v424 = vsub.f32 %v48, %v423
    %425 = vmatpush1.msra.mxu0 %v424
    %v426 = vand.u32 %v51, 4294901760
    %v427 = vsub.f32 %v51, %v426
    %428 = vmatprep.subr.mxu0 %v427
    %v429 = vand.u32 %v50, 4294901760
    %v430 = vsub.f32 %v50, %v429
    %431 = vmatpush1.msra.mxu0 %v430
    %v432 = vand.u32 %v53, 4294901760
    %v433 = vsub.f32 %v53, %v432
    %434 = vmatprep.subr.mxu0 %v433
    %v435 = vand.u32 %v52, 4294901760
    %v436 = vsub.f32 %v52, %v435
    %437 = vmatpush1.msra.mxu0 %v436
    %v438 = vand.u32 %v55, 4294901760
    %v439 = vsub.f32 %v55, %v438
    %440 = vmatprep.subr.mxu0 %v439
    %v441 = vand.u32 %v54, 4294901760
    %v442 = vsub.f32 %v54, %v441
    %443 = vmatpush1.msra.mxu0 %v442
    %v444 = vand.u32 %v57, 4294901760
    %v445 = vsub.f32 %v57, %v444
    %446 = vmatprep.subr.mxu0 %v445
    %v447 = vand.u32 %v56, 4294901760
    %v448 = vsub.f32 %v56, %v447
    %449 = vmatpush1.msra.mxu0 %v448
    %v450 = vand.u32 %v59, 4294901760
    %v451 = vsub.f32 %v59, %v450
    %452 = vmatprep.subr.mxu0 %v451
    %v453 = vand.u32 %v58, 4294901760
    %v454 = vsub.f32 %v58, %v453
    %455 = vmatpush1.msra.mxu0 %v454
    %v456 = vand.u32 %v61, 4294901760
    %v457 = vsub.f32 %v61, %v456
    %458 = vmatprep.subr.mxu0 %v457
    %v459 = vand.u32 %v60, 4294901760
    %v460 = vsub.f32 %v60, %v459
    %461 = vmatpush1.msra.mxu0 %v460
    %v462 = vand.u32 %v63, 4294901760
    %v463 = vsub.f32 %v63, %v462
    %464 = vmatprep.subr.mxu0 %v463
    %v465 = vand.u32 %v62, 4294901760
    %v466 = vsub.f32 %v62, %v465
    %467 = vmatpush1.msra.mxu0 %v466
    %v468 = vand.u32 %v65, 4294901760
    %v469 = vsub.f32 %v65, %v468
    %470 = vmatprep.subr.mxu0 %v469
    %v471 = vand.u32 %v64, 4294901760
    %v472 = vsub.f32 %v64, %v471
    %473 = vmatpush1.msra.mxu0 %v472
    %v474 = vand.u32 %v67, 4294901760
    %v475 = vsub.f32 %v67, %v474
    %476 = vmatprep.subr.mxu0 %v475
    %v477 = vand.u32 %v66, 4294901760
    %v478 = vsub.f32 %v66, %v477
    %479 = vmatpush1.msra.mxu0 %v478
    %v480 = vand.u32 %v69, 4294901760
    %v481 = vsub.f32 %v69, %v480
    %482 = vmatprep.subr.mxu0 %v481
    %v483 = vand.u32 %v68, 4294901760
    %v484 = vsub.f32 %v68, %v483
    %485 = vmatpush1.msra.mxu0 %v484
    %v486 = vand.u32 %v71, 4294901760
    %v487 = vsub.f32 %v71, %v486
    %488 = vmatprep.subr.mxu0 %v487
    %v489 = vand.u32 %v70, 4294901760
    %v490 = vsub.f32 %v70, %v489
    %491 = vmatpush1.msra.mxu0 %v490
    %v492 = vand.u32 %v73, 4294901760
    %v493 = vsub.f32 %v73, %v492
    %494 = vmatprep.subr.mxu0 %v493
    %v495 = vand.u32 %v72, 4294901760
    %v496 = vsub.f32 %v72, %v495
    %497 = vmatpush1.msra.mxu0 %v496
    %v498 = vand.u32 %v75, 4294901760
    %v499 = vsub.f32 %v75, %v498
    %500 = vmatprep.subr.mxu0 %v499
    %v501 = vand.u32 %v74, 4294901760
    %v502 = vsub.f32 %v74, %v501
    %503 = vmatpush1.msra.mxu0 %v502
    %v504 = vand.u32 %v77, 4294901760
    %v505 = vsub.f32 %v77, %v504
    %506 = vmatprep.subr.mxu0 %v505
    %v507 = vand.u32 %v76, 4294901760
    %v508 = vsub.f32 %v76, %v507
    %509 = vmatpush1.msra.mxu0 %v508
    %v510 = vand.u32 %v79, 4294901760
    %v511 = vsub.f32 %v79, %v510
    %512 = vmatprep.subr.mxu0 %v511
    %v513 = vand.u32 %v78, 4294901760
    %v514 = vsub.f32 %v78, %v513
    %515 = vmatpush1.msra.mxu0 %v514
    %516 = vmatprep.subr.mxu0 0.0
    %517 = vmatpush1.msra.mxu0 0.0
    %518 = vmatprep.subr.mxu0 0.0
    %519 = vmatpush1.msra.mxu0 0.0
    %520 = vmatprep.subr.mxu0 0.0
    %521 = vmatpush1.msra.mxu0 0.0
    %522 = vmatprep.subr.mxu0 0.0
    %523 = vmatpush1.msra.mxu0 0.0
    %524 = vmatprep.subr.mxu0 0.0
    %525 = vmatpush1.msra.mxu0 0.0
    %526 = vmatprep.subr.mxu0 0.0
    %527 = vmatpush1.msra.mxu0 0.0
    %528 = vmatprep.subr.mxu0 0.0
    %529 = vmatpush1.msra.mxu0 0.0
    %530 = vmatprep.subr.mxu0 0.0
    %531 = vmatpush1.msra.mxu0 0.0
    %532 = vmatprep.subr.mxu0 0.0
    %533 = vmatpush1.msra.mxu0 0.0
    %534 = vmatprep.subr.mxu0 0.0
    %535 = vmatpush1.msra.mxu0 0.0
    %536 = vmatprep.subr.mxu0 0.0
    %537 = vmatpush1.msra.mxu0 0.0
    %538 = vmatprep.subr.mxu0 0.0
    %539 = vmatpush1.msra.mxu0 0.0
    %540 = vmatprep.subr.mxu0 0.0
    %541 = vmatpush1.msra.mxu0 0.0
    %542 = vmatprep.subr.mxu0 0.0
    %543 = vmatpush1.msra.mxu0 0.0
    %544 = vmatprep.subr.mxu0 0.0
    %545 = vmatpush1.msra.mxu0 0.0
    %546 = vmatprep.subr.mxu0 0.0
    %547 = vmatpush1.msra.mxu0 0.0
    %548 = vmatprep.mubr.f32.mxu0 0.0
    %v549 = vand.u32 %v47, 4294901760
    %v550 = vsub.f32 %v47, %v549
    %551 = vmatmul.mubr.f32.gmra.mrb[0].mxu0 %v550
    %v552 = vpop.f32.mrb[0].mxu0
    %v553 = vadd.f32 %v416, %v552
    %v554 = vpop.f32.mrb[0].mxu0
    %v555 = vadd.f32 %v418, %v554
    %556 = vdwg.mxu0
    %v557 = vand.u32 %v49, 4294901760
    %558 = vmatprep.subr.mxu0 %v557
    %v559 = vand.u32 %v48, 4294901760
    %560 = vmatpush1.msra.mxu0 %v559
    %v561 = vand.u32 %v51, 4294901760
    %562 = vmatprep.subr.mxu0 %v561
    %v563 = vand.u32 %v50, 4294901760
    %564 = vmatpush1.msra.mxu0 %v563
    %v565 = vand.u32 %v53, 4294901760
    %566 = vmatprep.subr.mxu0 %v565
    %v567 = vand.u32 %v52, 4294901760
    %568 = vmatpush1.msra.mxu0 %v567
    %v569 = vand.u32 %v55, 4294901760
    %570 = vmatprep.subr.mxu0 %v569
    %v571 = vand.u32 %v54, 4294901760
    %572 = vmatpush1.msra.mxu0 %v571
    %v573 = vand.u32 %v57, 4294901760
    %574 = vmatprep.subr.mxu0 %v573
    %v575 = vand.u32 %v56, 4294901760
    %576 = vmatpush1.msra.mxu0 %v575
    %v577 = vand.u32 %v59, 4294901760
    %578 = vmatprep.subr.mxu0 %v577
    %v579 = vand.u32 %v58, 4294901760
    %580 = vmatpush1.msra.mxu0 %v579
    %v581 = vand.u32 %v61, 4294901760
    %582 = vmatprep.subr.mxu0 %v581
    %v583 = vand.u32 %v60, 4294901760
    %584 = vmatpush1.msra.mxu0 %v583
    %v585 = vand.u32 %v63, 4294901760
    %586 = vmatprep.subr.mxu0 %v585
    %v587 = vand.u32 %v62, 4294901760
    %588 = vmatpush1.msra.mxu0 %v587
    %v589 = vand.u32 %v65, 4294901760
    %590 = vmatprep.subr.mxu0 %v589
    %v591 = vand.u32 %v64, 4294901760
    %592 = vmatpush1.msra.mxu0 %v591
    %v593 = vand.u32 %v67, 4294901760
    %594 = vmatprep.subr.mxu0 %v593
    %v595 = vand.u32 %v66, 4294901760
    %596 = vmatpush1.msra.mxu0 %v595
    %v597 = vand.u32 %v69, 4294901760
    %598 = vmatprep.subr.mxu0 %v597
    %v599 = vand.u32 %v68, 4294901760
    %600 = vmatpush1.msra.mxu0 %v599
    %v601 = vand.u32 %v71, 4294901760
    %602 = vmatprep.subr.mxu0 %v601
    %v603 = vand.u32 %v70, 4294901760
    %604 = vmatpush1.msra.mxu0 %v603
    %v605 = vand.u32 %v73, 4294901760
    %606 = vmatprep.subr.mxu0 %v605
    %v607 = vand.u32 %v72, 4294901760
    %608 = vmatpush1.msra.mxu0 %v607
    %v609 = vand.u32 %v75, 4294901760
    %610 = vmatprep.subr.mxu0 %v609
    %v611 = vand.u32 %v74, 4294901760
    %612 = vmatpush1.msra.mxu0 %v611
    %v613 = vand.u32 %v77, 4294901760
    %614 = vmatprep.subr.mxu0 %v613
    %v615 = vand.u32 %v76, 4294901760
    %616 = vmatpush1.msra.mxu0 %v615
    %v617 = vand.u32 %v79, 4294901760
    %618 = vmatprep.subr.mxu0 %v617
    %v619 = vand.u32 %v78, 4294901760
    %620 = vmatpush1.msra.mxu0 %v619
    %621 = vmatprep.subr.mxu0 0.0
    %622 = vmatpush1.msra.mxu0 0.0
    %623 = vmatprep.subr.mxu0 0.0
    %624 = vmatpush1.msra.mxu0 0.0
    %625 = vmatprep.subr.mxu0 0.0
    %626 = vmatpush1.msra.mxu0 0.0
    %627 = vmatprep.subr.mxu0 0.0
    %628 = vmatpush1.msra.mxu0 0.0
    %629 = vmatprep.subr.mxu0 0.0
    %630 = vmatpush1.msra.mxu0 0.0
    %631 = vmatprep.subr.mxu0 0.0
    %632 = vmatpush1.msra.mxu0 0.0
    %633 = vmatprep.subr.mxu0 0.0
    %634 = vmatpush1.msra.mxu0 0.0
    %635 = vmatprep.subr.mxu0 0.0
    %636 = vmatpush1.msra.mxu0 0.0
    %637 = vmatprep.subr.mxu0 0.0
    %638 = vmatpush1.msra.mxu0 0.0
    %639 = vmatprep.subr.mxu0 0.0
    %640 = vmatpush1.msra.mxu0 0.0
    %641 = vmatprep.subr.mxu0 0.0
    %642 = vmatpush1.msra.mxu0 0.0
    %643 = vmatprep.subr.mxu0 0.0
    %644 = vmatpush1.msra.mxu0 0.0
    %645 = vmatprep.subr.mxu0 0.0
    %646 = vmatpush1.msra.mxu0 0.0
    %647 = vmatprep.subr.mxu0 0.0
    %648 = vmatpush1.msra.mxu0 0.0
    %649 = vmatprep.subr.mxu0 0.0
    %650 = vmatpush1.msra.mxu0 0.0
    %651 = vmatprep.subr.mxu0 0.0
    %652 = vmatpush1.msra.mxu0 0.0
    %653 = vmatprep.mubr.f32.mxu0 0.0
    %v654 = vand.u32 %v47, 4294901760
    %v655 = vsub.f32 %v47, %v654
    %v656 = vand.u32 %v655, 4294901760
    %657 = vmatmul.mubr.f32.gmra.mrb[0].mxu0 %v656
    %v658 = vpop.f32.mrb[0].mxu0
    %v659 = vadd.f32 %v553, %v658
    %v660 = vpop.f32.mrb[0].mxu0
    %v661 = vadd.f32 %v555, %v660
    %662 = vdwg.mxu0
    %v663 = vand.u32 %v49, 4294901760
    %v664 = vsub.f32 %v49, %v663
    %v665 = vand.u32 %v664, 4294901760
    %666 = vmatprep.subr.mxu0 %v665
    %v667 = vand.u32 %v48, 4294901760
    %v668 = vsub.f32 %v48, %v667
    %v669 = vand.u32 %v668, 4294901760
    %670 = vmatpush1.msra.mxu0 %v669
    %v671 = vand.u32 %v51, 4294901760
    %v672 = vsub.f32 %v51, %v671
    %v673 = vand.u32 %v672, 4294901760
    %674 = vmatprep.subr.mxu0 %v673
    %v675 = vand.u32 %v50, 4294901760
    %v676 = vsub.f32 %v50, %v675
    %v677 = vand.u32 %v676, 4294901760
    %678 = vmatpush1.msra.mxu0 %v677
    %v679 = vand.u32 %v53, 4294901760
    %v680 = vsub.f32 %v53, %v679
    %v681 = vand.u32 %v680, 4294901760
    %682 = vmatprep.subr.mxu0 %v681
    %v683 = vand.u32 %v52, 4294901760
    %v684 = vsub.f32 %v52, %v683
    %v685 = vand.u32 %v684, 4294901760
    %686 = vmatpush1.msra.mxu0 %v685
    %v687 = vand.u32 %v55, 4294901760
    %v688 = vsub.f32 %v55, %v687
    %v689 = vand.u32 %v688, 4294901760
    %690 = vmatprep.subr.mxu0 %v689
    %v691 = vand.u32 %v54, 4294901760
    %v692 = vsub.f32 %v54, %v691
    %v693 = vand.u32 %v692, 4294901760
    %694 = vmatpush1.msra.mxu0 %v693
    %v695 = vand.u32 %v57, 4294901760
    %v696 = vsub.f32 %v57, %v695
    %v697 = vand.u32 %v696, 4294901760
    %698 = vmatprep.subr.mxu0 %v697
    %v699 = vand.u32 %v56, 4294901760
    %v700 = vsub.f32 %v56, %v699
    %v701 = vand.u32 %v700, 4294901760
    %702 = vmatpush1.msra.mxu0 %v701
    %v703 = vand.u32 %v59, 4294901760
    %v704 = vsub.f32 %v59, %v703
    %v705 = vand.u32 %v704, 4294901760
    %706 = vmatprep.subr.mxu0 %v705
    %v707 = vand.u32 %v58, 4294901760
    %v708 = vsub.f32 %v58, %v707
    %v709 = vand.u32 %v708, 4294901760
    %710 = vmatpush1.msra.mxu0 %v709
    %v711 = vand.u32 %v61, 4294901760
    %v712 = vsub.f32 %v61, %v711
    %v713 = vand.u32 %v712, 4294901760
    %714 = vmatprep.subr.mxu0 %v713
    %v715 = vand.u32 %v60, 4294901760
    %v716 = vsub.f32 %v60, %v715
    %v717 = vand.u32 %v716, 4294901760
    %718 = vmatpush1.msra.mxu0 %v717
    %v719 = vand.u32 %v63, 4294901760
    %v720 = vsub.f32 %v63, %v719
    %v721 = vand.u32 %v720, 4294901760
    %722 = vmatprep.subr.mxu0 %v721
    %v723 = vand.u32 %v62, 4294901760
    %v724 = vsub.f32 %v62, %v723
    %v725 = vand.u32 %v724, 4294901760
    %726 = vmatpush1.msra.mxu0 %v725
    %v727 = vand.u32 %v65, 4294901760
    %v728 = vsub.f32 %v65, %v727
    %v729 = vand.u32 %v728, 4294901760
    %730 = vmatprep.subr.mxu0 %v729
    %v731 = vand.u32 %v64, 4294901760
    %v732 = vsub.f32 %v64, %v731
    %v733 = vand.u32 %v732, 4294901760
    %734 = vmatpush1.msra.mxu0 %v733
    %v735 = vand.u32 %v67, 4294901760
    %v736 = vsub.f32 %v67, %v735
    %v737 = vand.u32 %v736, 4294901760
    %738 = vmatprep.subr.mxu0 %v737
    %v739 = vand.u32 %v66, 4294901760
    %v740 = vsub.f32 %v66, %v739
    %v741 = vand.u32 %v740, 4294901760
    %742 = vmatpush1.msra.mxu0 %v741
    %v743 = vand.u32 %v69, 4294901760
    %v744 = vsub.f32 %v69, %v743
    %v745 = vand.u32 %v744, 4294901760
    %746 = vmatprep.subr.mxu0 %v745
    %v747 = vand.u32 %v68, 4294901760
    %v748 = vsub.f32 %v68, %v747
    %v749 = vand.u32 %v748, 4294901760
    %750 = vmatpush1.msra.mxu0 %v749
    %v751 = vand.u32 %v71, 4294901760
    %v752 = vsub.f32 %v71, %v751
    %v753 = vand.u32 %v752, 4294901760
    %754 = vmatprep.subr.mxu0 %v753
    %v755 = vand.u32 %v70, 4294901760
    %v756 = vsub.f32 %v70, %v755
    %v757 = vand.u32 %v756, 4294901760
    %758 = vmatpush1.msra.mxu0 %v757
    %v759 = vand.u32 %v73, 4294901760
    %v760 = vsub.f32 %v73, %v759
    %v761 = vand.u32 %v760, 4294901760
    %762 = vmatprep.subr.mxu0 %v761
    %v763 = vand.u32 %v72, 4294901760
    %v764 = vsub.f32 %v72, %v763
    %v765 = vand.u32 %v764, 4294901760
    %766 = vmatpush1.msra.mxu0 %v765
    %v767 = vand.u32 %v75, 4294901760
    %v768 = vsub.f32 %v75, %v767
    %v769 = vand.u32 %v768, 4294901760
    %770 = vmatprep.subr.mxu0 %v769
    %v771 = vand.u32 %v74, 4294901760
    %v772 = vsub.f32 %v74, %v771
    %v773 = vand.u32 %v772, 4294901760
    %774 = vmatpush1.msra.mxu0 %v773
    %v775 = vand.u32 %v77, 4294901760
    %v776 = vsub.f32 %v77, %v775
    %v777 = vand.u32 %v776, 4294901760
    %778 = vmatprep.subr.mxu0 %v777
    %v779 = vand.u32 %v76, 4294901760
    %v780 = vsub.f32 %v76, %v779
    %v781 = vand.u32 %v780, 4294901760
    %782 = vmatpush1.msra.mxu0 %v781
    %v783 = vand.u32 %v79, 4294901760
    %v784 = vsub.f32 %v79, %v783
    %v785 = vand.u32 %v784, 4294901760
    %786 = vmatprep.subr.mxu0 %v785
    %v787 = vand.u32 %v78, 4294901760
    %v788 = vsub.f32 %v78, %v787
    %v789 = vand.u32 %v788, 4294901760
    %790 = vmatpush1.msra.mxu0 %v789
    %791 = vmatprep.subr.mxu0 0.0
    %792 = vmatpush1.msra.mxu0 0.0
    %793 = vmatprep.subr.mxu0 0.0
    %794 = vmatpush1.msra.mxu0 0.0
    %795 = vmatprep.subr.mxu0 0.0
    %796 = vmatpush1.msra.mxu0 0.0
    %797 = vmatprep.subr.mxu0 0.0
    %798 = vmatpush1.msra.mxu0 0.0
    %799 = vmatprep.subr.mxu0 0.0
    %800 = vmatpush1.msra.mxu0 0.0
    %801 = vmatprep.subr.mxu0 0.0
    %802 = vmatpush1.msra.mxu0 0.0
    %803 = vmatprep.subr.mxu0 0.0
    %804 = vmatpush1.msra.mxu0 0.0
    %805 = vmatprep.subr.mxu0 0.0
    %806 = vmatpush1.msra.mxu0 0.0
    %807 = vmatprep.subr.mxu0 0.0
    %808 = vmatpush1.msra.mxu0 0.0
    %809 = vmatprep.subr.mxu0 0.0
    %810 = vmatpush1.msra.mxu0 0.0
    %811 = vmatprep.subr.mxu0 0.0
    %812 = vmatpush1.msra.mxu0 0.0
    %813 = vmatprep.subr.mxu0 0.0
    %814 = vmatpush1.msra.mxu0 0.0
    %815 = vmatprep.subr.mxu0 0.0
    %816 = vmatpush1.msra.mxu0 0.0
    %817 = vmatprep.subr.mxu0 0.0
    %818 = vmatpush1.msra.mxu0 0.0
    %819 = vmatprep.subr.mxu0 0.0
    %820 = vmatpush1.msra.mxu0 0.0
    %821 = vmatprep.subr.mxu0 0.0
    %822 = vmatpush1.msra.mxu0 0.0
    %823 = vmatprep.mubr.f32.mxu0 0.0
    %v824 = vand.u32 %v47, 4294901760
    %825 = vmatmul.mubr.f32.gmra.mrb[0].mxu0 %v824
    %v826 = vpop.f32.mrb[0].mxu0
    %v827 = vadd.f32 %v659, %v826
    %v828 = vpop.f32.mrb[0].mxu0
    %v829 = vadd.f32 %v661, %v828
    %830 = vdwg.mxu0
    %v831 = vand.u32 %v49, 4294901760
    %832 = vmatprep.subr.mxu0 %v831
    %v833 = vand.u32 %v48, 4294901760
    %834 = vmatpush1.msra.mxu0 %v833
    %v835 = vand.u32 %v51, 4294901760
    %836 = vmatprep.subr.mxu0 %v835
    %v837 = vand.u32 %v50, 4294901760
    %838 = vmatpush1.msra.mxu0 %v837
    %v839 = vand.u32 %v53, 4294901760
    %840 = vmatprep.subr.mxu0 %v839
    %v841 = vand.u32 %v52, 4294901760
    %842 = vmatpush1.msra.mxu0 %v841
    %v843 = vand.u32 %v55, 4294901760
    %844 = vmatprep.subr.mxu0 %v843
    %v845 = vand.u32 %v54, 4294901760
    %846 = vmatpush1.msra.mxu0 %v845
    %v847 = vand.u32 %v57, 4294901760
    %848 = vmatprep.subr.mxu0 %v847
    %v849 = vand.u32 %v56, 4294901760
    %850 = vmatpush1.msra.mxu0 %v849
    %v851 = vand.u32 %v59, 4294901760
    %852 = vmatprep.subr.mxu0 %v851
    %v853 = vand.u32 %v58, 4294901760
    %854 = vmatpush1.msra.mxu0 %v853
    %v855 = vand.u32 %v61, 4294901760
    %856 = vmatprep.subr.mxu0 %v855
    %v857 = vand.u32 %v60, 4294901760
    %858 = vmatpush1.msra.mxu0 %v857
    %v859 = vand.u32 %v63, 4294901760
    %860 = vmatprep.subr.mxu0 %v859
    %v861 = vand.u32 %v62, 4294901760
    %862 = vmatpush1.msra.mxu0 %v861
    %v863 = vand.u32 %v65, 4294901760
    %864 = vmatprep.subr.mxu0 %v863
    %v865 = vand.u32 %v64, 4294901760
    %866 = vmatpush1.msra.mxu0 %v865
    %v867 = vand.u32 %v67, 4294901760
    %868 = vmatprep.subr.mxu0 %v867
    %v869 = vand.u32 %v66, 4294901760
    %870 = vmatpush1.msra.mxu0 %v869
    %v871 = vand.u32 %v69, 4294901760
    %872 = vmatprep.subr.mxu0 %v871
    %v873 = vand.u32 %v68, 4294901760
    %874 = vmatpush1.msra.mxu0 %v873
    %v875 = vand.u32 %v71, 4294901760
    %876 = vmatprep.subr.mxu0 %v875
    %v877 = vand.u32 %v70, 4294901760
    %878 = vmatpush1.msra.mxu0 %v877
    %v879 = vand.u32 %v73, 4294901760
    %880 = vmatprep.subr.mxu0 %v879
    %v881 = vand.u32 %v72, 4294901760
    %882 = vmatpush1.msra.mxu0 %v881
    %v883 = vand.u32 %v75, 4294901760
    %884 = vmatprep.subr.mxu0 %v883
    %v885 = vand.u32 %v74, 4294901760
    %886 = vmatpush1.msra.mxu0 %v885
    %v887 = vand.u32 %v77, 4294901760
    %888 = vmatprep.subr.mxu0 %v887
    %v889 = vand.u32 %v76, 4294901760
    %890 = vmatpush1.msra.mxu0 %v889
    %v891 = vand.u32 %v79, 4294901760
    %892 = vmatprep.subr.mxu0 %v891
    %v893 = vand.u32 %v78, 4294901760
    %894 = vmatpush1.msra.mxu0 %v893
    %895 = vmatprep.subr.mxu0 0.0
    %896 = vmatpush1.msra.mxu0 0.0
    %897 = vmatprep.subr.mxu0 0.0
    %898 = vmatpush1.msra.mxu0 0.0
    %899 = vmatprep.subr.mxu0 0.0
    %900 = vmatpush1.msra.mxu0 0.0
    %901 = vmatprep.subr.mxu0 0.0
    %902 = vmatpush1.msra.mxu0 0.0
    %903 = vmatprep.subr.mxu0 0.0
    %904 = vmatpush1.msra.mxu0 0.0
    %905 = vmatprep.subr.mxu0 0.0
    %906 = vmatpush1.msra.mxu0 0.0
    %907 = vmatprep.subr.mxu0 0.0
    %908 = vmatpush1.msra.mxu0 0.0
    %909 = vmatprep.subr.mxu0 0.0
    %910 = vmatpush1.msra.mxu0 0.0
    %911 = vmatprep.subr.mxu0 0.0
    %912 = vmatpush1.msra.mxu0 0.0
    %913 = vmatprep.subr.mxu0 0.0
    %914 = vmatpush1.msra.mxu0 0.0
    %915 = vmatprep.subr.mxu0 0.0
    %916 = vmatpush1.msra.mxu0 0.0
    %917 = vmatprep.subr.mxu0 0.0
    %918 = vmatpush1.msra.mxu0 0.0
    %919 = vmatprep.subr.mxu0 0.0
    %920 = vmatpush1.msra.mxu0 0.0
    %921 = vmatprep.subr.mxu0 0.0
    %922 = vmatpush1.msra.mxu0 0.0
    %923 = vmatprep.subr.mxu0 0.0
    %924 = vmatpush1.msra.mxu0 0.0
    %925 = vmatprep.subr.mxu0 0.0
    %926 = vmatpush1.msra.mxu0 0.0
    %927 = vmatprep.mubr.f32.mxu0 0.0
    %v928 = vand.u32 %v47, 4294901760
    %929 = vmatmul.mubr.f32.gmra.mrb[0].mxu0 %v928
    %v930 = vpop.f32.mrb[0].mxu0
    %v931 = vadd.f32 %v827, %v930
    %v932 = vpop.f32.mrb[0].mxu0
    %v933 = vadd.f32 %v829, %v932
    %934 = vdwg.mxu0
    %v935 = vld [vmem:[%s3] sm:$0x1]
    %v937 = vlaneseq
    %v938 = vshrl.u32 %v937, 7
    %v939 = vsub.s32 0, %v938
    %v940 = vrot.slane %v935, %v939
    %v942 = vsub.f32 %v933, %v940
    %943 = vst [vmem:[#allocation7] sm:$0xff] %v942
    %v944 = vmul.f32 %v931, 0.5
    %v945 = vld [vmem:[%s2] sm:$0x1]
    %v947 = vlaneseq
    %v948 = vshrl.u32 %v947, 7
    %v949 = vsub.s32 0, %v948
    %v950 = vrot.slane %v945, %v949
    %v952 = vadd.f32 %v944, %v950
    %v953 = vmul.f32 %v952, %v47
    %954 = vadd.xlane.f32.xlu0 %v953
    %v955 = vpop.xlane.xlu0 %954
    %v956 = vld [vmem:[%s4] sm:$0x1]
    %v957 = vmul.f32 %v942, 0.25
    %v959 = vlaneseq
    %v960 = vshrl.u32 %v959, 7
    %v961 = vsub.s32 0, %v960
    %v962 = vrot.slane %v956, %v961
    %v964 = vadd.f32 %v962, %v957
    %v965 = vmul.f32 %v964, %v942
    %966 = vadd.xlane.f32.xlu0 %v965
    %v967 = vpop.xlane.xlu0 %966
    %v968 = vadd.f32 %v955, %v967
    %969 = vst [vmem:[#allocation7 + $0x8] sm:$0xff] %v968
    // Predicated region
    $region30: #{tpu_custom_call.1} parent=1 // pred_check
      _
    $region31: #{tpu_custom_call.1} parent=1 // pred_check_branch
      %971 = sbr.rel (0) target = $region33
    $region32: #{tpu_custom_call.1} parent=1 // pred_region
      %s973 = ssub.s32 256, 256
      %974 = vsyncadd [#allocation4], %s973
      %s976 = sshll.u32 [#allocation7], 4
      %s977 = int_to_ptr.vmem [resolvable:$true] %s976
      %979 = dma.vmem_to_hbm [thread:$0]  %s977, 256, %s5, [#allocation4]
    $region33: #{tpu_custom_call.1} parent=1 // pred_fallthru
      _
    // Predicated region
    $region34: #{tpu_custom_call.1} parent=1 // pred_check
      _
    $region35: #{tpu_custom_call.1} parent=1 // pred_check_branch
      %981 = sbr.rel (0) target = $region37
    $region36: #{tpu_custom_call.1} parent=1 // pred_region
      %982 = dma.done [#allocation4], 256
    $region37: #{tpu_custom_call.1} parent=1 // pred_fallthru
      _
    %983 = vsyncpa [#allocation3], 1
    %984 = vsyncpa [#allocation6], 1
    %985 = vsyncpa [#allocation4], 1

</llo_original>
